<compile_context>
chip_gen: v7x
topology: tpu7x:2x2x1
jax: 0.10.0
libtpu: 0.0.40
codegen_flags: <defaults>
</compile_context>

<pallas_src>
import functools

import jax
import jax.numpy as jnp
import numpy as np
from jax import lax
from jax.experimental import pallas as pl
from jax.experimental.pallas import tpu as pltpu


# ----------------------------------------------------------------------------
# Fused kernel: one grid step = one lane-packed tile, channels-first (C, L).
# ----------------------------------------------------------------------------
def _bottleneck_kernel(x_ref, mask_ref, w1_ref, b1_ref, w2_ref, b2_ref,
                       w3_ref, b3_ref, o_ref, taps_ref, *, width,
                       compute_dtype):
    f32 = jnp.float32
    cdt = jnp.dtype(compute_dtype)
    P = w1_ref.shape[0]          # planes
    L = x_ref.shape[-1]          # lane width (samples_per_step * padded H*W)

    def to_c(a):                 # cast to compute dtype only if needed (no-op in f32 path)
        return a if a.dtype == cdt else a.astype(cdt)

    # ---- conv1 (1x1) + bn1 + relu (bn scale folded into w1 in the wrapper) ---
    out1 = jnp.dot(w1_ref[...], to_c(x_ref[...]), preferred_element_type=f32)
    out1 = jnp.maximum(out1 + b1_ref[...], 0.0)                  # (P, L) f32

    # ---- conv2 (3x3, stride=1, pad=1) + bn2 + relu ---------------------------
    # Tap (dy,dx) of pixel (y,x) is out1[:, y+dy-1, x+dx-1]; in the flattened
    # lane layout that is a circular lane rotation by off=(dy-1)*W+(dx-1).
    # Out-of-image / wrapped / lane-padding positions are zeroed by the
    # precomputed per-tap masks, so the 9 shifted+masked taps stacked along the
    # contraction dim reproduce the zero-padded conv exactly and feed a single
    # (P, 9P) @ (9P, L) MXU matmul instead of 9 small-K dots.
    out1_t = out1.astype(taps_ref.dtype)
    for t in range(9):
        dy, dx = divmod(t, 3)
        off = (dy - 1) * width + (dx - 1)
        shifted = out1_t if off == 0 else pltpu.roll(out1_t, shift=(-off) % L,
                                                     axis=1)
        taps_ref[pl.ds(t * P, P), :] = shifted * mask_ref[t]
    out2 = jnp.dot(w2_ref[...], to_c(taps_ref[...]), preferred_element_type=f32)
    out2 = jnp.maximum(out2 + b2_ref[...], 0.0)                  # (P, L) f32

    # ---- conv3 (1x1) + bn3 + residual + relu ---------------------------------
    out3 = jnp.dot(w3_ref[...], to_c(out2), preferred_element_type=f32)
    out3 = out3 + b3_ref[...]
    # Residual: re-read the resident x tile late (keeps its live range short).
    o_ref[...] = jnp.maximum(out3 + x_ref[...], 0.0).astype(o_ref.dtype)


# ----------------------------------------------------------------------------
# Wrapper: BN folding, weight repack/cast, mask precompute, lane packing.
# ----------------------------------------------------------------------------
def _fold_bn(gamma, beta, mean, var, eps):
    scale = gamma / jnp.sqrt(var + eps)
    return scale, beta - mean * scale


def _round_up(x, m):
    return (x + m - 1) // m * m


def bottleneck_forward(x_nchw, params, *, eps=1e-5, compute_dtype=jnp.float32,
                       samples_per_step=1):
    """Pallas Bottleneck_Baseline.forward (stride=1, no downsample). NCHW in/out."""
    N, Cin, H, W = x_nchw.shape
    P = params['w1'].shape[0]            # planes
    Cout = params['w3'].shape[0]         # planes * expansion
    assert Cin == Cout, "no-downsample bottleneck requires inplanes == planes*expansion"
    # TODO(synk): stride != 1 and the `downsample` branch are not implemented
    # (module defaults: stride=1, downsample=None).

    NB = samples_per_step
    assert N % NB == 0
    NG = N // NB
    HW = H * W
    HW_pad = _round_up(HW, 128)          # lane-dense (128-multiple) stores
    L = NB * HW_pad

    cdt = jnp.dtype(compute_dtype)
    # Taps scratch keeps f32 unless P is a multiple of the packed sublane tile
    # (8 rows f32 / 16 rows bf16), so the per-tap sub-block stores stay aligned.
    rows_per_tile = 8 * (4 // cdt.itemsize)
    taps_dtype = compute_dtype if P % rows_per_tile == 0 else jnp.float32
    tdt = jnp.dtype(taps_dtype)

    # ---- fold BN (inference, running stats) into conv weights; cast here -----
    s1, b1 = _fold_bn(params['g1'], params['b1'], params['m1'], params['v1'], eps)
    s2, b2 = _fold_bn(params['g2'], params['b2'], params['m2'], params['v2'], eps)
    s3, b3 = _fold_bn(params['g3'], params['b3'], params['m3'], params['v3'], eps)

    w1f = (params['w1'][:, :, 0, 0] * s1[:, None]).astype(cdt)            # (P, Cin)
    w2f = params['w2'] * s2[:, None, None, None]                          # (P, P, 3, 3)
    # Stack the 9 taps along the contraction dim: column index = (ky*3+kx)*P + ci.
    w2s = jnp.transpose(w2f, (0, 2, 3, 1)).reshape(P, 9 * P).astype(cdt)  # (P, 9P)
    w3f = (params['w3'][:, :, 0, 0] * s3[:, None]).astype(cdt)            # (Cout, P)
    b1f = b1.reshape(P, 1).astype(jnp.float32)
    b2f = b2.reshape(P, 1).astype(jnp.float32)
    b3f = b3.reshape(Cout, 1).astype(jnp.float32)

    # ---- precompute the 9 border-validity masks (per lane position) ----------
    q = jnp.arange(HW_pad)
    y0, x0 = q // W, q % W
    in_img = q < HW
    mask_rows = []
    for t in range(9):
        dy, dx = divmod(t, 3)
        yy, xx = y0 + dy - 1, x0 + dx - 1
        mask_rows.append(in_img & (yy >= 0) & (yy < H) & (xx >= 0) & (xx < W))
    mask = jnp.stack(mask_rows).astype(tdt)            # (9, HW_pad)
    mask = jnp.tile(mask, (1, NB)).reshape(9, 1, L)    # same mask for each packed sample

    # ---- pack input: (NG, Cin, NB*HW_pad); samples contiguous along lanes ----
    x3 = x_nchw.reshape(N, Cin, HW).astype(jnp.float32)
    if HW_pad != HW:
        x3 = jnp.pad(x3, ((0, 0), (0, 0), (0, HW_pad - HW)))
    x_pack = (x3.reshape(NG, NB, Cin, HW_pad)
                .transpose(0, 2, 1, 3)
                .reshape(NG, Cin, L))                  # free when NB == 1

    # ---- explicit VMEM budget --------------------------------------------------
    est = (2 * (Cin + Cout) * L * 4                      # x/out tiles, double-buffered
           + 2 * 9 * L * tdt.itemsize                    # masks
           + 2 * (w1f.size + w2s.size + w3f.size) * cdt.itemsize
           + 2 * (2 * P + Cout) * 4                      # biases
           + 9 * P * L * tdt.itemsize)                   # taps scratch
    vmem_limit = int(min(96 * 2**20, max(32 * 2**20, 2 * est)))

    kernel = functools.partial(_bottleneck_kernel, width=W,
                               compute_dtype=compute_dtype)
    out = pl.pallas_call(
        kernel,
        out_shape=jax.ShapeDtypeStruct((NG, Cout, L), jnp.float32),
        grid=(NG,),
        in_specs=[
            pl.BlockSpec((None, Cin, L), lambda n: (n, 0, 0)),   # x tile (per step)
            pl.BlockSpec((9, 1, L), lambda n: (0, 0, 0)),        # border masks (const)
            pl.BlockSpec((P, Cin), lambda n: (0, 0)),            # w1 (bn1 folded)
            pl.BlockSpec((P, 1), lambda n: (0, 0)),              # bn1 bias
            pl.BlockSpec((P, 9 * P), lambda n: (0, 0)),          # w2 taps stacked along K
            pl.BlockSpec((P, 1), lambda n: (0, 0)),              # bn2 bias
            pl.BlockSpec((Cout, P), lambda n: (0, 0)),           # w3 (bn3 folded)
            pl.BlockSpec((Cout, 1), lambda n: (0, 0)),           # bn3 bias
        ],
        out_specs=pl.BlockSpec((None, Cout, L), lambda n: (n, 0, 0)),
        scratch_shapes=[pltpu.VMEM((9 * P, L), taps_dtype)],
        compiler_params=pltpu.CompilerParams(
            dimension_semantics=("parallel",),          # shard batch steps across TCs
            vmem_limit_bytes=vmem_limit),
    )(x_pack, mask, w1f, b1f, w2s, b2f, w3f, b3f)

    # ---- unpack: (NG, Cout, L) -> (N, Cout, H, W) ------------------------------
    out = (out.reshape(NG, Cout, NB, HW_pad)
              .transpose(0, 2, 1, 3)
              .reshape(N, Cout, HW_pad)[:, :, :HW]
              .reshape(N, Cout, H, W))
    return out


# ----------------------------------------------------------------------------
# Pure-JAX reference (mirrors the PyTorch forward, BN in inference mode).
# ----------------------------------------------------------------------------
def reference_forward(x, p, eps=1e-5):
    def conv(x, w, stride=1, pad=0):
        return lax.conv_general_dilated(
            x, w, (stride, stride), [(pad, pad), (pad, pad)],
            dimension_numbers=('NCHW', 'OIHW', 'NCHW'))

    def bn(x, g, b, m, v):
        r = lambda a: a.reshape(1, -1, 1, 1)
        return (x - r(m)) / jnp.sqrt(r(v) + eps) * r(g) + r(b)

    residual = x
    out = jnp.maximum(bn(conv(x, p['w1']), p['g1'], p['b1'], p['m1'], p['v1']), 0.0)
    out = jnp.maximum(bn(conv(out, p['w2'], pad=1), p['g2'], p['b2'], p['m2'], p['v2']), 0.0)
    out = bn(conv(out, p['w3']), p['g3'], p['b3'], p['m3'], p['v3'])
    return jnp.maximum(out + residual, 0.0)


# ----------------------------------------------------------------------------
# Deterministic parameter construction.
# ----------------------------------------------------------------------------
def make_params(key, inplanes, planes, expansion=4):
    ks = jax.random.split(key, 15)
    f32 = jnp.float32

    def w(k, shape, fan_in):
        return (jax.random.normal(k, shape, f32) / np.sqrt(fan_in)).astype(f32)

    out3 = planes * expansion
    return dict(
        w1=w(ks[0], (planes, inplanes, 1, 1), inplanes),
        g1=jax.random.uniform(ks[1], (planes,), f32, 0.8, 1.2),
        b1=0.05 * jax.random.normal(ks[2], (planes,), f32),
        m1=0.05 * jax.random.normal(ks[3], (planes,), f32),
        v1=jax.random.uniform(ks[4], (planes,), f32, 0.5, 1.5),

        w2=w(ks[5], (planes, planes, 3, 3), planes * 9),
        g2=jax.random.uniform(ks[6], (planes,), f32, 0.8, 1.2),
        b2=0.05 * jax.random.normal(ks[7], (planes,), f32),
        m2=0.05 * jax.random.normal(ks[8], (planes,), f32),
        v2=jax.random.uniform(ks[9], (planes,), f32, 0.5, 1.5),

        w3=w(ks[10], (out3, planes, 1, 1), planes),
        g3=jax.random.uniform(ks[11], (out3,), f32, 0.8, 1.2),
        b3=0.05 * jax.random.normal(ks[12], (out3,), f32),
        m3=0.05 * jax.random.normal(ks[13], (out3,), f32),
        v3=jax.random.uniform(ks[14], (out3,), f32, 0.5, 1.5),
    )


if __name__ == "__main__":
    # Small shapes: batch=2, inplanes=16 (= planes*expansion), planes=4, spatial=16.
    N, inplanes, planes, H, W = 2, 16, 4, 16, 16

    key = jax.random.PRNGKey(0)
    kx, kp = jax.random.split(key)
    x = jax.random.normal(kx, (N, inplanes, H, W), jnp.float32)   # NCHW, like PyTorch
    params = make_params(kp, inplanes, planes)

    ref = jax.block_until_ready(reference_forward(x, params))

    # f32 path (default): bit-tight parity, one sample per grid step.
    out = jax.block_until_ready(bottleneck_forward(x, params))
    np.testing.assert_allclose(np.asarray(out), np.asarray(ref), rtol=1e-4, atol=1e-4)
    assert out.shape == (N, planes * 4, H, W)

    # Lane-packed path: both samples packed along the lane axis of one grid step
    # (what you'd do at 7x7 / 14x14 stages to keep lanes 128-dense).
    out_pk = jax.block_until_ready(
        bottleneck_forward(x, params, samples_per_step=2))
    np.testing.assert_allclose(np.asarray(out_pk), np.asarray(ref), rtol=1e-4, atol=1e-4)

    # bf16 compute path (weights cast in the wrapper, f32 accumulation on MXU):
    # looser tolerance as flagged in the review.
    out_bf = jax.block_until_ready(
        bottleneck_forward(x, params, compute_dtype=jnp.bfloat16))
    np.testing.assert_allclose(np.asarray(out_bf), np.asarray(ref), rtol=2e-2, atol=1e-1)

    print("KERNEL_OK")
</pallas_src>

<mosaic_0001>
module attributes {stable_mosaic.version = 11 : i64} {
  func.func @_bottleneck_kernel(%arg0: i32, %arg1: memref<1x16x256xf32, #tpu.memory_space<vmem>>, %arg2: memref<9x1x256xf32, #tpu.memory_space<vmem>>, %arg3: memref<4x16xf32, #tpu.memory_space<vmem>>, %arg4: memref<4x1xf32, #tpu.memory_space<vmem>>, %arg5: memref<4x36xf32, #tpu.memory_space<vmem>>, %arg6: memref<4x1xf32, #tpu.memory_space<vmem>>, %arg7: memref<16x4xf32, #tpu.memory_space<vmem>>, %arg8: memref<16x1xf32, #tpu.memory_space<vmem>>, %arg9: memref<1x16x256xf32, #tpu.memory_space<vmem>>, %arg10: memref<36x256xf32, #tpu.memory_space<vmem>>) attributes {dimension_semantics = [#tpu.dimension_semantics<parallel>], iteration_bounds = array<i64: 2>, scalar_prefetch = 0 : i64, scratch_operands = 1 : i64, tpu.core_type = #tpu.core_type<tc>, window_params = [{transform_indices = @transform_0, window_bounds = array<i64: 1, 16, 256>}, {pipeline_mode = #tpu.pipeline_mode<synchronous>, transform_indices = @transform_1, window_bounds = array<i64: 9, 1, 256>}, {pipeline_mode = #tpu.pipeline_mode<synchronous>, transform_indices = @transform_2, window_bounds = array<i64: 4, 16>}, {pipeline_mode = #tpu.pipeline_mode<synchronous>, transform_indices = @transform_3, window_bounds = array<i64: 4, 1>}, {pipeline_mode = #tpu.pipeline_mode<synchronous>, transform_indices = @transform_4, window_bounds = array<i64: 4, 36>}, {pipeline_mode = #tpu.pipeline_mode<synchronous>, transform_indices = @transform_5, window_bounds = array<i64: 4, 1>}, {pipeline_mode = #tpu.pipeline_mode<synchronous>, transform_indices = @transform_6, window_bounds = array<i64: 16, 4>}, {pipeline_mode = #tpu.pipeline_mode<synchronous>, transform_indices = @transform_7, window_bounds = array<i64: 16, 1>}, {transform_indices = @transform_8, window_bounds = array<i64: 1, 16, 256>}]} {
    %c0 = arith.constant 0 : index
    %c0_0 = arith.constant 0 : index
    %0 = vector.load %arg3[%c0, %c0_0] : memref<4x16xf32, #tpu.memory_space<vmem>>, vector<4x16xf32>
    %c0_1 = arith.constant 0 : index
    %c0_2 = arith.constant 0 : index
    %c0_3 = arith.constant 0 : index
    %1 = vector.load %arg1[%c0_1, %c0_2, %c0_3] : memref<1x16x256xf32, #tpu.memory_space<vmem>>, vector<1x16x256xf32>
    %2 = vector.shape_cast %1 : vector<1x16x256xf32> to vector<16x256xf32>
    %cst = arith.constant dense<0.000000e+00> : vector<4x256xf32>
    %3 = tpu.matmul %0, %2, %cst {dimension_numbers = #tpu.dot_dimension_numbers<[1], [0], [0], [1], [0, 0, 1, 1], [], []>} : vector<4x16xf32>, vector<16x256xf32>, vector<4x256xf32> -> vector<4x256xf32>
    %c0_4 = arith.constant 0 : index
    %c0_5 = arith.constant 0 : index
    %4 = vector.load %arg4[%c0_4, %c0_5] : memref<4x1xf32, #tpu.memory_space<vmem>>, vector<4x1xf32>
    %5 = vector.broadcast %4 : vector<4x1xf32> to vector<4x256xf32>
    %6 = arith.addf %3, %5 : vector<4x256xf32>
    %cst_6 = arith.constant 0.000000e+00 : f32
    %7 = vector.broadcast %cst_6 : f32 to vector<4x256xf32>
    %8 = arith.maximumf %6, %7 : vector<4x256xf32>
    %c17_i32 = arith.constant 17 : i32
    %9 = tpu.dynamic_rotate %8 by %c17_i32 dim 1 : vector<4x256xf32>, i32 -> vector<4x256xf32>
    %c0_7 = arith.constant 0 : index
    %c0_8 = arith.constant 0 : index
    %c0_9 = arith.constant 0 : index
    %10 = vector.load %arg2[%c0_7, %c0_8, %c0_9] : memref<9x1x256xf32, #tpu.memory_space<vmem>>, vector<1x1x256xf32>
    %11 = vector.shape_cast %10 : vector<1x1x256xf32> to vector<1x256xf32>
    %12 = vector.broadcast %11 : vector<1x256xf32> to vector<4x256xf32>
    %13 = arith.mulf %9, %12 : vector<4x256xf32>
    %c0_10 = arith.constant 0 : index
    %c0_11 = arith.constant 0 : index
    %14 = vector.load %arg10[%c0_10, %c0_11] : memref<36x256xf32, #tpu.memory_space<vmem>>, vector<4x256xf32>
    tpu.vector_store %arg10[%c0_10, %c0_11], %13 {strides = array<i32>} : memref<36x256xf32, #tpu.memory_space<vmem>>, vector<4x256xf32>,
    %c16_i32 = arith.constant 16 : i32
    %15 = tpu.dynamic_rotate %8 by %c16_i32 dim 1 : vector<4x256xf32>, i32 -> vector<4x256xf32>
    %c1 = arith.constant 1 : index
    %c0_12 = arith.constant 0 : index
    %c0_13 = arith.constant 0 : index
    %16 = vector.load %arg2[%c1, %c0_12, %c0_13] : memref<9x1x256xf32, #tpu.memory_space<vmem>>, vector<1x1x256xf32>
    %17 = vector.shape_cast %16 : vector<1x1x256xf32> to vector<1x256xf32>
    %18 = vector.broadcast %17 : vector<1x256xf32> to vector<4x256xf32>
    %19 = arith.mulf %15, %18 : vector<4x256xf32>
    %c4 = arith.constant 4 : index
    %c0_14 = arith.constant 0 : index
    %20 = vector.load %arg10[%c4, %c0_14] : memref<36x256xf32, #tpu.memory_space<vmem>>, vector<4x256xf32>
    tpu.vector_store %arg10[%c4, %c0_14], %19 {strides = array<i32>} : memref<36x256xf32, #tpu.memory_space<vmem>>, vector<4x256xf32>,
    %c15_i32 = arith.constant 15 : i32
    %21 = tpu.dynamic_rotate %8 by %c15_i32 dim 1 : vector<4x256xf32>, i32 -> vector<4x256xf32>
    %c2 = arith.constant 2 : index
    %c0_15 = arith.constant 0 : index
    %c0_16 = arith.constant 0 : index
    %22 = vector.load %arg2[%c2, %c0_15, %c0_16] : memref<9x1x256xf32, #tpu.memory_space<vmem>>, vector<1x1x256xf32>
    %23 = vector.shape_cast %22 : vector<1x1x256xf32> to vector<1x256xf32>
    %24 = vector.broadcast %23 : vector<1x256xf32> to vector<4x256xf32>
    %25 = arith.mulf %21, %24 : vector<4x256xf32>
    %c8 = arith.constant 8 : index
    %c0_17 = arith.constant 0 : index
    %26 = vector.load %arg10[%c8, %c0_17] : memref<36x256xf32, #tpu.memory_space<vmem>>, vector<4x256xf32>
    tpu.vector_store %arg10[%c8, %c0_17], %25 {strides = array<i32>} : memref<36x256xf32, #tpu.memory_space<vmem>>, vector<4x256xf32>,
    %c1_i32 = arith.constant 1 : i32
    %27 = tpu.dynamic_rotate %8 by %c1_i32 dim 1 : vector<4x256xf32>, i32 -> vector<4x256xf32>
    %c3 = arith.constant 3 : index
    %c0_18 = arith.constant 0 : index
    %c0_19 = arith.constant 0 : index
    %28 = vector.load %arg2[%c3, %c0_18, %c0_19] : memref<9x1x256xf32, #tpu.memory_space<vmem>>, vector<1x1x256xf32>
    %29 = vector.shape_cast %28 : vector<1x1x256xf32> to vector<1x256xf32>
    %30 = vector.broadcast %29 : vector<1x256xf32> to vector<4x256xf32>
    %31 = arith.mulf %27, %30 : vector<4x256xf32>
    %c12 = arith.constant 12 : index
    %c0_20 = arith.constant 0 : index
    %32 = vector.load %arg10[%c12, %c0_20] : memref<36x256xf32, #tpu.memory_space<vmem>>, vector<4x256xf32>
    tpu.vector_store %arg10[%c12, %c0_20], %31 {strides = array<i32>} : memref<36x256xf32, #tpu.memory_space<vmem>>, vector<4x256xf32>,
    %c4_21 = arith.constant 4 : index
    %c0_22 = arith.constant 0 : index
    %c0_23 = arith.constant 0 : index
    %33 = vector.load %arg2[%c4_21, %c0_22, %c0_23] : memref<9x1x256xf32, #tpu.memory_space<vmem>>, vector<1x1x256xf32>
    %34 = vector.shape_cast %33 : vector<1x1x256xf32> to vector<1x256xf32>
    %35 = vector.broadcast %34 : vector<1x256xf32> to vector<4x256xf32>
    %36 = arith.mulf %8, %35 : vector<4x256xf32>
    %c16 = arith.constant 16 : index
    %c0_24 = arith.constant 0 : index
    %37 = vector.load %arg10[%c16, %c0_24] : memref<36x256xf32, #tpu.memory_space<vmem>>, vector<4x256xf32>
    tpu.vector_store %arg10[%c16, %c0_24], %36 {strides = array<i32>} : memref<36x256xf32, #tpu.memory_space<vmem>>, vector<4x256xf32>,
    %c255_i32 = arith.constant 255 : i32
    %38 = tpu.dynamic_rotate %8 by %c255_i32 dim 1 : vector<4x256xf32>, i32 -> vector<4x256xf32>
    %c5 = arith.constant 5 : index
    %c0_25 = arith.constant 0 : index
    %c0_26 = arith.constant 0 : index
    %39 = vector.load %arg2[%c5, %c0_25, %c0_26] : memref<9x1x256xf32, #tpu.memory_space<vmem>>, vector<1x1x256xf32>
    %40 = vector.shape_cast %39 : vector<1x1x256xf32> to vector<1x256xf32>
    %41 = vector.broadcast %40 : vector<1x256xf32> to vector<4x256xf32>
    %42 = arith.mulf %38, %41 : vector<4x256xf32>
    %c20 = arith.constant 20 : index
    %c0_27 = arith.constant 0 : index
    %43 = vector.load %arg10[%c20, %c0_27] : memref<36x256xf32, #tpu.memory_space<vmem>>, vector<4x256xf32>
    tpu.vector_store %arg10[%c20, %c0_27], %42 {strides = array<i32>} : memref<36x256xf32, #tpu.memory_space<vmem>>, vector<4x256xf32>,
    %c241_i32 = arith.constant 241 : i32
    %44 = tpu.dynamic_rotate %8 by %c241_i32 dim 1 : vector<4x256xf32>, i32 -> vector<4x256xf32>
    %c6 = arith.constant 6 : index
    %c0_28 = arith.constant 0 : index
    %c0_29 = arith.constant 0 : index
    %45 = vector.load %arg2[%c6, %c0_28, %c0_29] : memref<9x1x256xf32, #tpu.memory_space<vmem>>, vector<1x1x256xf32>
    %46 = vector.shape_cast %45 : vector<1x1x256xf32> to vector<1x256xf32>
    %47 = vector.broadcast %46 : vector<1x256xf32> to vector<4x256xf32>
    %48 = arith.mulf %44, %47 : vector<4x256xf32>
    %c24 = arith.constant 24 : index
    %c0_30 = arith.constant 0 : index
    %49 = vector.load %arg10[%c24, %c0_30] : memref<36x256xf32, #tpu.memory_space<vmem>>, vector<4x256xf32>
    tpu.vector_store %arg10[%c24, %c0_30], %48 {strides = array<i32>} : memref<36x256xf32, #tpu.memory_space<vmem>>, vector<4x256xf32>,
    %c240_i32 = arith.constant 240 : i32
    %50 = tpu.dynamic_rotate %8 by %c240_i32 dim 1 : vector<4x256xf32>, i32 -> vector<4x256xf32>
    %c7 = arith.constant 7 : index
    %c0_31 = arith.constant 0 : index
    %c0_32 = arith.constant 0 : index
    %51 = vector.load %arg2[%c7, %c0_31, %c0_32] : memref<9x1x256xf32, #tpu.memory_space<vmem>>, vector<1x1x256xf32>
    %52 = vector.shape_cast %51 : vector<1x1x256xf32> to vector<1x256xf32>
    %53 = vector.broadcast %52 : vector<1x256xf32> to vector<4x256xf32>
    %54 = arith.mulf %50, %53 : vector<4x256xf32>
    %c28 = arith.constant 28 : index
    %c0_33 = arith.constant 0 : index
    %55 = vector.load %arg10[%c28, %c0_33] : memref<36x256xf32, #tpu.memory_space<vmem>>, vector<4x256xf32>
    tpu.vector_store %arg10[%c28, %c0_33], %54 {strides = array<i32>} : memref<36x256xf32, #tpu.memory_space<vmem>>, vector<4x256xf32>,
    %c239_i32 = arith.constant 239 : i32
    %56 = tpu.dynamic_rotate %8 by %c239_i32 dim 1 : vector<4x256xf32>, i32 -> vector<4x256xf32>
    %c8_34 = arith.constant 8 : index
    %c0_35 = arith.constant 0 : index
    %c0_36 = arith.constant 0 : index
    %57 = vector.load %arg2[%c8_34, %c0_35, %c0_36] : memref<9x1x256xf32, #tpu.memory_space<vmem>>, vector<1x1x256xf32>
    %58 = vector.shape_cast %57 : vector<1x1x256xf32> to vector<1x256xf32>
    %59 = vector.broadcast %58 : vector<1x256xf32> to vector<4x256xf32>
    %60 = arith.mulf %56, %59 : vector<4x256xf32>
    %c32 = arith.constant 32 : index
    %c0_37 = arith.constant 0 : index
    %61 = vector.load %arg10[%c32, %c0_37] : memref<36x256xf32, #tpu.memory_space<vmem>>, vector<4x256xf32>
    tpu.vector_store %arg10[%c32, %c0_37], %60 {strides = array<i32>} : memref<36x256xf32, #tpu.memory_space<vmem>>, vector<4x256xf32>,
    %c0_38 = arith.constant 0 : index
    %c0_39 = arith.constant 0 : index
    %62 = vector.load %arg5[%c0_38, %c0_39] : memref<4x36xf32, #tpu.memory_space<vmem>>, vector<4x36xf32>
    %c0_40 = arith.constant 0 : index
    %c0_41 = arith.constant 0 : index
    %63 = vector.load %arg10[%c0_40, %c0_41] : memref<36x256xf32, #tpu.memory_space<vmem>>, vector<36x256xf32>
    %cst_42 = arith.constant dense<0.000000e+00> : vector<4x256xf32>
    %64 = tpu.matmul %62, %63, %cst_42 {dimension_numbers = #tpu.dot_dimension_numbers<[1], [0], [0], [1], [0, 0, 1, 1], [], []>} : vector<4x36xf32>, vector<36x256xf32>, vector<4x256xf32> -> vector<4x256xf32>
    %c0_43 = arith.constant 0 : index
    %c0_44 = arith.constant 0 : index
    %65 = vector.load %arg6[%c0_43, %c0_44] : memref<4x1xf32, #tpu.memory_space<vmem>>, vector<4x1xf32>
    %66 = vector.broadcast %65 : vector<4x1xf32> to vector<4x256xf32>
    %67 = arith.addf %64, %66 : vector<4x256xf32>
    %cst_45 = arith.constant 0.000000e+00 : f32
    %68 = vector.broadcast %cst_45 : f32 to vector<4x256xf32>
    %69 = arith.maximumf %67, %68 : vector<4x256xf32>
    %c0_46 = arith.constant 0 : index
    %c0_47 = arith.constant 0 : index
    %70 = vector.load %arg7[%c0_46, %c0_47] : memref<16x4xf32, #tpu.memory_space<vmem>>, vector<16x4xf32>
    %cst_48 = arith.constant dense<0.000000e+00> : vector<16x256xf32>
    %71 = tpu.matmul %70, %69, %cst_48 {dimension_numbers = #tpu.dot_dimension_numbers<[1], [0], [0], [1], [0, 0, 1, 1], [], []>} : vector<16x4xf32>, vector<4x256xf32>, vector<16x256xf32> -> vector<16x256xf32>
    %c0_49 = arith.constant 0 : index
    %c0_50 = arith.constant 0 : index
    %72 = vector.load %arg8[%c0_49, %c0_50] : memref<16x1xf32, #tpu.memory_space<vmem>>, vector<16x1xf32>
    %73 = vector.broadcast %72 : vector<16x1xf32> to vector<16x256xf32>
    %74 = arith.addf %71, %73 : vector<16x256xf32>
    %c0_51 = arith.constant 0 : index
    %c0_52 = arith.constant 0 : index
    %c0_53 = arith.constant 0 : index
    %75 = vector.load %arg1[%c0_51, %c0_52, %c0_53] : memref<1x16x256xf32, #tpu.memory_space<vmem>>, vector<1x16x256xf32>
    %76 = vector.shape_cast %75 : vector<1x16x256xf32> to vector<16x256xf32>
    %77 = arith.addf %74, %76 : vector<16x256xf32>
    %cst_54 = arith.constant 0.000000e+00 : f32
    %78 = vector.broadcast %cst_54 : f32 to vector<16x256xf32>
    %79 = arith.maximumf %77, %78 : vector<16x256xf32>
    %c0_55 = arith.constant 0 : index
    %c0_56 = arith.constant 0 : index
    %c0_57 = arith.constant 0 : index
    %80 = vector.load %arg9[%c0_55, %c0_56, %c0_57] : memref<1x16x256xf32, #tpu.memory_space<vmem>>, vector<1x16x256xf32>
    %81 = vector.shape_cast %80 : vector<1x16x256xf32> to vector<16x256xf32>
    %82 = vector.shape_cast %79 : vector<16x256xf32> to vector<1x16x256xf32>
    tpu.vector_store %arg9[%c0_55, %c0_56, %c0_57], %82 {strides = array<i32>} : memref<1x16x256xf32, #tpu.memory_space<vmem>>, vector<1x16x256xf32>,
    return
  }
  func.func @transform_0(%arg0: i32) -> (i32, i32, i32) {
    %c0_i32 = arith.constant 0 : i32
    %c0_i32_0 = arith.constant 0 : i32
    %c0_i32_1 = arith.constant 0 : i32
    return %arg0, %c0_i32, %c0_i32_0 : i32, i32, i32
  }
  func.func @transform_1(%arg0: i32) -> (i32, i32, i32) {
    %c0_i32 = arith.constant 0 : i32
    %c0_i32_0 = arith.constant 0 : i32
    %c0_i32_1 = arith.constant 0 : i32
    %c0_i32_2 = arith.constant 0 : i32
    return %c0_i32, %c0_i32_0, %c0_i32_1 : i32, i32, i32
  }
  func.func @transform_2(%arg0: i32) -> (i32, i32) {
    %c0_i32 = arith.constant 0 : i32
    %c0_i32_0 = arith.constant 0 : i32
    %c0_i32_1 = arith.constant 0 : i32
    return %c0_i32, %c0_i32_0 : i32, i32
  }
  func.func @transform_3(%arg0: i32) -> (i32, i32) {
    %c0_i32 = arith.constant 0 : i32
    %c0_i32_0 = arith.constant 0 : i32
    %c0_i32_1 = arith.constant 0 : i32
    return %c0_i32, %c0_i32_0 : i32, i32
  }
  func.func @transform_4(%arg0: i32) -> (i32, i32) {
    %c0_i32 = arith.constant 0 : i32
    %c0_i32_0 = arith.constant 0 : i32
    %c0_i32_1 = arith.constant 0 : i32
    return %c0_i32, %c0_i32_0 : i32, i32
  }
  func.func @transform_5(%arg0: i32) -> (i32, i32) {
    %c0_i32 = arith.constant 0 : i32
    %c0_i32_0 = arith.constant 0 : i32
    %c0_i32_1 = arith.constant 0 : i32
    return %c0_i32, %c0_i32_0 : i32, i32
  }
  func.func @transform_6(%arg0: i32) -> (i32, i32) {
    %c0_i32 = arith.constant 0 : i32
    %c0_i32_0 = arith.constant 0 : i32
    %c0_i32_1 = arith.constant 0 : i32
    return %c0_i32, %c0_i32_0 : i32, i32
  }
  func.func @transform_7(%arg0: i32) -> (i32, i32) {
    %c0_i32 = arith.constant 0 : i32
    %c0_i32_0 = arith.constant 0 : i32
    %c0_i32_1 = arith.constant 0 : i32
    return %c0_i32, %c0_i32_0 : i32, i32
  }
  func.func @transform_8(%arg0: i32) -> (i32, i32, i32) {
    %c0_i32 = arith.constant 0 : i32
    %c0_i32_0 = arith.constant 0 : i32
    %c0_i32_1 = arith.constant 0 : i32
    return %arg0, %c0_i32, %c0_i32_0 : i32, i32, i32
  }
}

</mosaic_0001>

<llo_original>
// kernel: tpu_custom_call.1
$region0: #{tpu_custom_call.1}
  #allocation0 [shape = 'u32[]', space=smem, size = 0x4, offset = 0x4, fixed_abs, tag = 'smem constant byte address 0x4 - core index']
  #allocation1 [shape = 'u32[144,128]{1,0:T(1,128)}', space=vmem, size = 0x12000, scoped, tag = 'internal scratch']
  #allocation2 [shape = 'f32[36,256]{1,0:T(8,128)}', space=vmem, size = 0xa000, scoped, tag = 'scratch operand']
  %s0 = inlined_call_operand.hbm [shape: f32[2,16,256], index: 0, kind: input, shape index: {}]
  %s1 = inlined_call_operand.vmem [shape: f32[9,1,256], index: 1, kind: input, shape index: {}]
  %s2 = inlined_call_operand.vmem [shape: f32[4,16], index: 2, kind: input, shape index: {}]
  %s3 = inlined_call_operand.vmem [shape: f32[4,1], index: 3, kind: input, shape index: {}]
  %s4 = inlined_call_operand.vmem [shape: f32[4,36], index: 4, kind: input, shape index: {}]
  %s5 = inlined_call_operand.vmem [shape: f32[4,1], index: 5, kind: input, shape index: {}]
  %s6 = inlined_call_operand.vmem [shape: f32[16,4], index: 6, kind: input, shape index: {}]
  %s7 = inlined_call_operand.vmem [shape: f32[16,1], index: 7, kind: input, shape index: {}]
  %s8 = inlined_call_operand.hbm [shape: f32[2,16,256], index: 8, kind: output, shape index: {}]
  %s9 = sld [smem:[#allocation0]]
  $region69: #{tpu_custom_call.1} parent=0
    _
  %s11 = ssub.s32 1, %s9
  %s12 = scalar_select 0, %s11, %s9
  $region1: #{tpu_custom_call.1} parent=0
    #allocation3 [shape = 'u8[32768]{0}', space=vmem, size = 0x8000, scoped, tag = 'input window, operand 0']
    #allocation4 [shape = 's32[2]{0}', space=sflag, size = 0x8, scoped, tag = 'scoped memory for tpu_custom_call.1']
    #allocation5 [shape = 's32[2]{0}', space=sflag, size = 0x8, scoped, tag = 'scoped memory for tpu_custom_call.1']
    #allocation6 [shape = 'u8[32768]{0}', space=vmem, size = 0x8000, scoped, tag = 'output window, operand 0']
    %13 = vsyncpa [#allocation4], 0
    %s14 = scalar_lea.sflag [#allocation4], 1
    %15 = vsyncpa %s14, 0
    %16 = vsyncpa [#allocation5], 0
    %s17 = scalar_lea.sflag [#allocation5], 1
    %18 = vsyncpa %s17, 0
    loop: start=0, step=1, limit=4
    $region2: #{tpu_custom_call.1} parent=1 // loop_pre_header
      _
    $region3: #{tpu_custom_call.1} parent=1 // loop_header
      %s20 = sphi 0, %s24
      %p21 = scmp.ge.s32.totalorder %s20, 4
      %s30 = sphi 0, %s32
      %s33 = sphi 0, %s30
      %s34 = sphi 0, %s33
      %s50 = sphi 0, %s34
      %s54 = sphi 0, %s54
      %s56 = sphi 0, %s54
      %s57 = sphi 0, %s56
      %s71 = sphi 0, %s57
      %s75 = sphi 0, %s75
      %s77 = sphi 0, %s75
      %s78 = sphi 0, %s77
      %s92 = sphi 0, %s78
      %s96 = sphi 0, %s96
      %s98 = sphi 0, %s96
      %s99 = sphi 0, %s98
      %s113 = sphi 0, %s99
      %s117 = sphi 0, %s117
      %s119 = sphi 0, %s117
      %s120 = sphi 0, %s119
      %s134 = sphi 0, %s120
      %s138 = sphi 0, %s138
      %s140 = sphi 0, %s138
      %s141 = sphi 0, %s140
      %s155 = sphi 0, %s141
      %s159 = sphi 0, %s159
      %s161 = sphi 0, %s159
      %s162 = sphi 0, %s161
      %s176 = sphi 0, %s162
      %s180 = sphi 0, %s180
      %s182 = sphi 0, %s180
      %s183 = sphi 0, %s182
      %s197 = sphi 0, %s183
      %s203 = sphi 0, %s205
      %s206 = sphi 0, %s203
      %s207 = sphi 0, %s206
      %s223 = sphi 0, %s207
    $region4: #{tpu_custom_call.1} parent=1 // loop_header_branch
      %23 = sbr.rel (%p21) target = $region8
    $region5: #{tpu_custom_call.1} parent=1 // loop_body
      %s25 = ssub.s32 %s20, 1
      %s26 = ssub.s32 %s20, 2
      %s27 = sadd.s32 %s20, 1
      %s28 = ssub.s32 %s20, %s27
      %p29 = scmp.eq.s32.totalorder %s28, 0
      %s31 = sadd.s32 %s30, 1
      %s32 = scalar_select %p29, %s30, %s31
      %p35 = pneg %p29
      %p36 = scmp.eq.s32.totalorder %s20, 1
      %p37 = por %p35, %p36
      %p38 = scmp.ne.s32.totalorder %s30, %s33
      %p39 = scmp.eq.s32.totalorder %s20, 0
      %p40 = por %p38, %p39
      %p41 = scmp.ne.s32.totalorder %s30, %s33
      %p42 = scmp.eq.s32.totalorder %s25, 1
      %p43 = por %p41, %p42
      %p44 = scmp.ne.s32.totalorder %s33, %s34
      %p45 = scmp.eq.s32.totalorder %s25, 0
      %p46 = por %p44, %p45
      %p47 = scmp.ne.s32.totalorder %s33, %s34
      %p48 = scmp.eq.s32.totalorder %s26, 1
      %p49 = por %p47, %p48
      %p51 = scmp.ne.s32.totalorder %s34, %s50
      %p52 = scmp.eq.s32.totalorder %s26, 0
      %p53 = por %p51, %p52
      %s55 = sadd.s32 %s54, 1
      %p58 = scmp.eq.s32.totalorder %s20, 1
      %p59 = scmp.ne.s32.totalorder %s54, %s56
      %p60 = scmp.eq.s32.totalorder %s20, 0
      %p61 = por %p59, %p60
      %p62 = scmp.ne.s32.totalorder %s54, %s56
      %p63 = scmp.eq.s32.totalorder %s25, 1
      %p64 = por %p62, %p63
      %p65 = scmp.ne.s32.totalorder %s56, %s57
      %p66 = scmp.eq.s32.totalorder %s25, 0
      %p67 = por %p65, %p66
      %p68 = scmp.ne.s32.totalorder %s56, %s57
      %p69 = scmp.eq.s32.totalorder %s26, 1
      %p70 = por %p68, %p69
      %p72 = scmp.ne.s32.totalorder %s57, %s71
      %p73 = scmp.eq.s32.totalorder %s26, 0
      %p74 = por %p72, %p73
      %s76 = sadd.s32 %s75, 1
      %p79 = scmp.eq.s32.totalorder %s20, 1
      %p80 = scmp.ne.s32.totalorder %s75, %s77
      %p81 = scmp.eq.s32.totalorder %s20, 0
      %p82 = por %p80, %p81
      %p83 = scmp.ne.s32.totalorder %s75, %s77
      %p84 = scmp.eq.s32.totalorder %s25, 1
      %p85 = por %p83, %p84
      %p86 = scmp.ne.s32.totalorder %s77, %s78
      %p87 = scmp.eq.s32.totalorder %s25, 0
      %p88 = por %p86, %p87
      %p89 = scmp.ne.s32.totalorder %s77, %s78
      %p90 = scmp.eq.s32.totalorder %s26, 1
      %p91 = por %p89, %p90
      %p93 = scmp.ne.s32.totalorder %s78, %s92
      %p94 = scmp.eq.s32.totalorder %s26, 0
      %p95 = por %p93, %p94
      %s97 = sadd.s32 %s96, 1
      %p100 = scmp.eq.s32.totalorder %s20, 1
      %p101 = scmp.ne.s32.totalorder %s96, %s98
      %p102 = scmp.eq.s32.totalorder %s20, 0
      %p103 = por %p101, %p102
      %p104 = scmp.ne.s32.totalorder %s96, %s98
      %p105 = scmp.eq.s32.totalorder %s25, 1
      %p106 = por %p104, %p105
      %p107 = scmp.ne.s32.totalorder %s98, %s99
      %p108 = scmp.eq.s32.totalorder %s25, 0
      %p109 = por %p107, %p108
      %p110 = scmp.ne.s32.totalorder %s98, %s99
      %p111 = scmp.eq.s32.totalorder %s26, 1
      %p112 = por %p110, %p111
      %p114 = scmp.ne.s32.totalorder %s99, %s113
      %p115 = scmp.eq.s32.totalorder %s26, 0
      %p116 = por %p114, %p115
      %s118 = sadd.s32 %s117, 1
      %p121 = scmp.eq.s32.totalorder %s20, 1
      %p122 = scmp.ne.s32.totalorder %s117, %s119
      %p123 = scmp.eq.s32.totalorder %s20, 0
      %p124 = por %p122, %p123
      %p125 = scmp.ne.s32.totalorder %s117, %s119
      %p126 = scmp.eq.s32.totalorder %s25, 1
      %p127 = por %p125, %p126
      %p128 = scmp.ne.s32.totalorder %s119, %s120
      %p129 = scmp.eq.s32.totalorder %s25, 0
      %p130 = por %p128, %p129
      %p131 = scmp.ne.s32.totalorder %s119, %s120
      %p132 = scmp.eq.s32.totalorder %s26, 1
      %p133 = por %p131, %p132
      %p135 = scmp.ne.s32.totalorder %s120, %s134
      %p136 = scmp.eq.s32.totalorder %s26, 0
      %p137 = por %p135, %p136
      %s139 = sadd.s32 %s138, 1
      %p142 = scmp.eq.s32.totalorder %s20, 1
      %p143 = scmp.ne.s32.totalorder %s138, %s140
      %p144 = scmp.eq.s32.totalorder %s20, 0
      %p145 = por %p143, %p144
      %p146 = scmp.ne.s32.totalorder %s138, %s140
      %p147 = scmp.eq.s32.totalorder %s25, 1
      %p148 = por %p146, %p147
      %p149 = scmp.ne.s32.totalorder %s140, %s141
      %p150 = scmp.eq.s32.totalorder %s25, 0
      %p151 = por %p149, %p150
      %p152 = scmp.ne.s32.totalorder %s140, %s141
      %p153 = scmp.eq.s32.totalorder %s26, 1
      %p154 = por %p152, %p153
      %p156 = scmp.ne.s32.totalorder %s141, %s155
      %p157 = scmp.eq.s32.totalorder %s26, 0
      %p158 = por %p156, %p157
      %s160 = sadd.s32 %s159, 1
      %p163 = scmp.eq.s32.totalorder %s20, 1
      %p164 = scmp.ne.s32.totalorder %s159, %s161
      %p165 = scmp.eq.s32.totalorder %s20, 0
      %p166 = por %p164, %p165
      %p167 = scmp.ne.s32.totalorder %s159, %s161
      %p168 = scmp.eq.s32.totalorder %s25, 1
      %p169 = por %p167, %p168
      %p170 = scmp.ne.s32.totalorder %s161, %s162
      %p171 = scmp.eq.s32.totalorder %s25, 0
      %p172 = por %p170, %p171
      %p173 = scmp.ne.s32.totalorder %s161, %s162
      %p174 = scmp.eq.s32.totalorder %s26, 1
      %p175 = por %p173, %p174
      %p177 = scmp.ne.s32.totalorder %s162, %s176
      %p178 = scmp.eq.s32.totalorder %s26, 0
      %p179 = por %p177, %p178
      %s181 = sadd.s32 %s180, 1
      %p184 = scmp.eq.s32.totalorder %s20, 1
      %p185 = scmp.ne.s32.totalorder %s180, %s182
      %p186 = scmp.eq.s32.totalorder %s20, 0
      %p187 = por %p185, %p186
      %p188 = scmp.ne.s32.totalorder %s180, %s182
      %p189 = scmp.eq.s32.totalorder %s25, 1
      %p190 = por %p188, %p189
      %p191 = scmp.ne.s32.totalorder %s182, %s183
      %p192 = scmp.eq.s32.totalorder %s25, 0
      %p193 = por %p191, %p192
      %p194 = scmp.ne.s32.totalorder %s182, %s183
      %p195 = scmp.eq.s32.totalorder %s26, 1
      %p196 = por %p194, %p195
      %p198 = scmp.ne.s32.totalorder %s183, %s197
      %p199 = scmp.eq.s32.totalorder %s26, 0
      %p200 = por %p198, %p199
      %s201 = ssub.s32 %s20, %s27
      %p202 = scmp.eq.s32.totalorder %s201, 0
      %s204 = sadd.s32 %s203, 1
      %s205 = scalar_select %p202, %s203, %s204
      %p208 = pneg %p202
      %p209 = scmp.eq.s32.totalorder %s20, 1
      %p210 = por %p208, %p209
      %p211 = scmp.ne.s32.totalorder %s203, %s206
      %p212 = scmp.eq.s32.totalorder %s20, 0
      %p213 = por %p211, %p212
      %p214 = scmp.ne.s32.totalorder %s203, %s206
      %p215 = scmp.eq.s32.totalorder %s25, 1
      %p216 = por %p214, %p215
      %p217 = scmp.ne.s32.totalorder %s206, %s207
      %p218 = scmp.eq.s32.totalorder %s25, 0
      %p219 = por %p217, %p218
      %p220 = scmp.ne.s32.totalorder %s206, %s207
      %p221 = scmp.eq.s32.totalorder %s26, 1
      %p222 = por %p220, %p221
      %p224 = scmp.ne.s32.totalorder %s207, %s223
      %p225 = scmp.eq.s32.totalorder %s26, 0
      %p226 = por %p224, %p225
      %p227 = scmp.le.s32.totalorder 1, %s20
      %p228 = scmp.lt.s32.totalorder %s20, 3
      %p229 = pnand %p227, %p228
      %p230 = pneg %p229
      // Predicated region
      $region9: #{tpu_custom_call.1} parent=5 // pred_check
        _
      $region10: #{tpu_custom_call.1} parent=5 // pred_check_branch
        %232 = sbr.rel (%p229) target = $region12
      $region11: #{tpu_custom_call.1} parent=5 // pred_region
        %s233 = ssub.s32 %s20, 1
        // Predicated region
        $region13: #{tpu_custom_call.1} parent=11 // pred_check
          %p234 = pneg %p67
        $region14: #{tpu_custom_call.1} parent=11 // pred_check_branch
          %236 = sbr.rel (%p234) target = $region16
        $region15: #{tpu_custom_call.1} parent=11 // pred_region
          _
        $region16: #{tpu_custom_call.1} parent=11 // pred_fallthru
          _
        // Predicated region
        $region17: #{tpu_custom_call.1} parent=11 // pred_check
          %p237 = pneg %p88
        $region18: #{tpu_custom_call.1} parent=11 // pred_check_branch
          %239 = sbr.rel (%p237) target = $region20
        $region19: #{tpu_custom_call.1} parent=11 // pred_region
          _
        $region20: #{tpu_custom_call.1} parent=11 // pred_fallthru
          _
        // Predicated region
        $region21: #{tpu_custom_call.1} parent=11 // pred_check
          %p240 = pneg %p109
        $region22: #{tpu_custom_call.1} parent=11 // pred_check_branch
          %242 = sbr.rel (%p240) target = $region24
        $region23: #{tpu_custom_call.1} parent=11 // pred_region
          _
        $region24: #{tpu_custom_call.1} parent=11 // pred_fallthru
          _
        // Predicated region
        $region25: #{tpu_custom_call.1} parent=11 // pred_check
          %p243 = pneg %p130
        $region26: #{tpu_custom_call.1} parent=11 // pred_check_branch
          %245 = sbr.rel (%p243) target = $region28
        $region27: #{tpu_custom_call.1} parent=11 // pred_region
          _
        $region28: #{tpu_custom_call.1} parent=11 // pred_fallthru
          _
        // Predicated region
        $region29: #{tpu_custom_call.1} parent=11 // pred_check
          %p246 = pneg %p151
        $region30: #{tpu_custom_call.1} parent=11 // pred_check_branch
          %248 = sbr.rel (%p246) target = $region32
        $region31: #{tpu_custom_call.1} parent=11 // pred_region
          _
        $region32: #{tpu_custom_call.1} parent=11 // pred_fallthru
          _
        // Predicated region
        $region33: #{tpu_custom_call.1} parent=11 // pred_check
          %p249 = pneg %p172
        $region34: #{tpu_custom_call.1} parent=11 // pred_check_branch
          %251 = sbr.rel (%p249) target = $region36
        $region35: #{tpu_custom_call.1} parent=11 // pred_region
          _
        $region36: #{tpu_custom_call.1} parent=11 // pred_fallthru
          _
        // Predicated region
        $region37: #{tpu_custom_call.1} parent=11 // pred_check
          %p252 = pneg %p193
        $region38: #{tpu_custom_call.1} parent=11 // pred_check_branch
          %254 = sbr.rel (%p252) target = $region40
        $region39: #{tpu_custom_call.1} parent=11 // pred_region
          _
        $region40: #{tpu_custom_call.1} parent=11 // pred_fallthru
          _
      $region12: #{tpu_custom_call.1} parent=5 // pred_fallthru
        _
      %p255 = scmp.lt.s32.totalorder %s20, 2
      // Predicated region
      $region41: #{tpu_custom_call.1} parent=5 // pred_check
        %p256 = pneg %p255
      $region42: #{tpu_custom_call.1} parent=5 // pred_check_branch
        %258 = sbr.rel (%p256) target = $region44
      $region43: #{tpu_custom_call.1} parent=5 // pred_region
        // Predicated region
        $region45: #{tpu_custom_call.1} parent=43 // pred_check
          %p259 = pneg %p40
        $region46: #{tpu_custom_call.1} parent=43 // pred_check_branch
          %261 = sbr.rel (%p259) target = $region48
        $region47: #{tpu_custom_call.1} parent=43 // pred_region
          %s262 = sand.u32 %s30, 1
          %s263 = scalar_lea.sflag [#allocation4], %s262
          %s264 = sand.u32 %s30, 1
          %s265 = smul.addr %s264, 32
          %s266 = scalar_lea.vmem [#allocation3], %s265
          %s268 = ssub.s32 512, 512
          %269 = vsyncadd %s263, %s268
          %s270 = smul.addr %s20, 4
          %s271 = smul.addr %s270, 128
          %s272 = scalar_lea.hbm %s0, %s271
          %s273 = sshll.u32 %s266, 4
          %s274 = int_to_ptr.vmem [resolvable:$true] %s273
          %279 = dma.hbm_to_vmem [thread:$0]  %s272, 512, %s274, %s263, 256, 256, 16
        $region48: #{tpu_custom_call.1} parent=43 // pred_fallthru
          _
      $region44: #{tpu_custom_call.1} parent=5 // pred_fallthru
        _
      %p280 = scmp.le.s32.totalorder 1, %s20
      %p281 = scmp.lt.s32.totalorder %s20, 3
      %p282 = pnand %p280, %p281
      %p283 = pneg %p282
      // Predicated region
      $region49: #{tpu_custom_call.1} parent=5 // pred_check
        _
      $region50: #{tpu_custom_call.1} parent=5 // pred_check_branch
        %285 = sbr.rel (%p282) target = $region52
      $region51: #{tpu_custom_call.1} parent=5 // pred_region
        %s286 = ssub.s32 %s20, 1
        %s287 = sand.u32 %s33, 1
        %s288 = scalar_lea.sflag [#allocation4], %s287
        %s289 = sand.u32 %s33, 1
        %s290 = smul.addr %s289, 32
        %s291 = scalar_lea.vmem [#allocation3], %s290
        // Predicated region
        $region53: #{tpu_custom_call.1} parent=51 // pred_check
          %p292 = pneg %p46
        $region54: #{tpu_custom_call.1} parent=51 // pred_check_branch
          %294 = sbr.rel (%p292) target = $region56
        $region55: #{tpu_custom_call.1} parent=51 // pred_region
          %295 = dma.done %s288, 512
        $region56: #{tpu_custom_call.1} parent=51 // pred_fallthru
          _
        %s296 = sand.u32 %s33, 1
        %s297 = scalar_lea.sflag [#allocation4], %s296
        %s298 = sand.u32 %s33, 1
        %s299 = smul.addr %s298, 32
        %s300 = scalar_lea.vmem [#allocation3], %s299
        %p301 = pneg %p46
        %p302 = pneg %p43
        %p303 = pneg %p67
        %p304 = pneg %p64
        %p305 = pneg %p88
        %p306 = pneg %p85
        %p307 = pneg %p109
        %p308 = pneg %p106
        %p309 = pneg %p130
        %p310 = pneg %p127
        %p311 = pneg %p151
        %p312 = pneg %p148
        %p313 = pneg %p172
        %p314 = pneg %p169
        %p315 = pneg %p193
        %p316 = pneg %p190
        %p317 = pneg %p219
        %p318 = pneg %p216
        %s319 = sand.u32 %s206, 1
        %s320 = scalar_lea.sflag [#allocation5], %s319
        %s321 = sand.u32 %s206, 1
        %s322 = smul.addr %s321, 32
        %s323 = scalar_lea.vmem [#allocation6], %s322
        %v324 = vld [vmem:[%s2] sm:$0xf]
        %v325 = vld [vmem:[%s291] sm:$0xff]
        %v326 = vld [vmem:[%s291 + $0x8] sm:$0xff]
        %v327 = vld [vmem:[%s291 + $0x10] sm:$0xff]
        %v328 = vld [vmem:[%s291 + $0x18] sm:$0xff]
        %v329 = vld [vmem:[%s3] sm:$0xf]
        %331 = vset.pattern.permute.xlu0 0
        %332 = vperm.xlu0 %331, %v329
        %v333 = vpop.permute.xlu0 %332
        %vm335 = vcmask 130048
        %v337 = vsel %vm335, %v324, 0
        %339 = vmatprep.subr.mxu0 %v326
        %340 = vmatpush1.msra.mxu0 %v325
        %341 = vmatprep.subr.mxu0 %v328
        %342 = vmatpush1.msra.mxu0 %v327
        %343 = vmatprep.subr.mxu0 0.0
        %344 = vmatpush1.msra.mxu0 0.0
        %345 = vmatprep.subr.mxu0 0.0
        %346 = vmatpush1.msra.mxu0 0.0
        %347 = vmatprep.subr.mxu0 0.0
        %348 = vmatpush1.msra.mxu0 0.0
        %349 = vmatprep.subr.mxu0 0.0
        %350 = vmatpush1.msra.mxu0 0.0
        %351 = vmatprep.subr.mxu0 0.0
        %352 = vmatpush1.msra.mxu0 0.0
        %353 = vmatprep.subr.mxu0 0.0
        %354 = vmatpush1.msra.mxu0 0.0
        %355 = vmatprep.subr.mxu0 0.0
        %356 = vmatpush1.msra.mxu0 0.0
        %357 = vmatprep.subr.mxu0 0.0
        %358 = vmatpush1.msra.mxu0 0.0
        %359 = vmatprep.subr.mxu0 0.0
        %360 = vmatpush1.msra.mxu0 0.0
        %361 = vmatprep.subr.mxu0 0.0
        %362 = vmatpush1.msra.mxu0 0.0
        %363 = vmatprep.subr.mxu0 0.0
        %364 = vmatpush1.msra.mxu0 0.0
        %365 = vmatprep.subr.mxu0 0.0
        %366 = vmatpush1.msra.mxu0 0.0
        %367 = vmatprep.subr.mxu0 0.0
        %368 = vmatpush1.msra.mxu0 0.0
        %369 = vmatprep.subr.mxu0 0.0
        %370 = vmatpush1.msra.mxu0 0.0
        %371 = vmatprep.subr.mxu0 0.0
        %372 = vmatpush1.msra.mxu0 0.0
        %373 = vmatprep.subr.mxu0 0.0
        %374 = vmatpush1.msra.mxu0 0.0
        %375 = vmatprep.subr.mxu0 0.0
        %376 = vmatpush1.msra.mxu0 0.0
        %377 = vmatprep.subr.mxu0 0.0
        %378 = vmatpush1.msra.mxu0 0.0
        %379 = vmatprep.subr.mxu0 0.0
        %380 = vmatpush1.msra.mxu0 0.0
        %381 = vmatprep.subr.mxu0 0.0
        %382 = vmatpush1.msra.mxu0 0.0
        %383 = vmatprep.subr.mxu0 0.0
        %384 = vmatpush1.msra.mxu0 0.0
        %385 = vmatprep.subr.mxu0 0.0
        %386 = vmatpush1.msra.mxu0 0.0
        %387 = vmatprep.subr.mxu0 0.0
        %388 = vmatpush1.msra.mxu0 0.0
        %389 = vmatprep.subr.mxu0 0.0
        %390 = vmatpush1.msra.mxu0 0.0
        %391 = vmatprep.subr.mxu0 0.0
        %392 = vmatpush1.msra.mxu0 0.0
        %393 = vmatprep.subr.mxu0 0.0
        %394 = vmatpush1.msra.mxu0 0.0
        %395 = vmatprep.subr.mxu0 0.0
        %396 = vmatpush1.msra.mxu0 0.0
        %397 = vmatprep.subr.mxu0 0.0
        %398 = vmatpush1.msra.mxu0 0.0
        %399 = vmatprep.subr.mxu0 0.0
        %400 = vmatpush1.msra.mxu0 0.0
        %401 = vmatprep.subr.mxu0 0.0
        %402 = vmatpush1.msra.mxu0 0.0
        %403 = vmatprep.mubr.f32.mxu0 0.0
        %404 = vmatmul.mubr.f32.gmra.mrb[0].mxu0 %v337
        %v405 = vpop.f32.mrb[0].mxu0
        %v406 = vadd.f32 %v333, %v405
        %v407 = vpop.f32.mrb[0].mxu0
        %v408 = vadd.f32 %v333, %v407
        %409 = vdwg.mxu0
        %v410 = vmax.f32 %v406, 0.0
        %v411 = vmax.f32 %v408, 0.0
        %412 = vrot.lane.b32.xlu0 %v410, 17
        %v413 = vpop.permute.xlu0 %412
        %414 = vrot.lane.b32.xlu0 %v411, 17
        %v415 = vpop.permute.xlu0 %414
        %v416 = vlaneseq
        %v417 = vand.u32 %v416, 127
        %vm418 = vcmp.lt.s32.totalorder %v417, 17
        %v419 = vsel %vm418, %v413, %v415
        %v420 = vsel %vm418, %v415, %v413
        %v421 = vld [vmem:[%s1] sm:$0x3]
        %v423 = vlaneseq
        %v424 = vshrl.u32 %v423, 7
        %v425 = vsub.s32 0, %v424
        %v426 = vrot.slane %v421, %v425
        %v427 = vlaneseq
        %v428 = vshrl.u32 %v427, 7
        %v429 = vsub.s32 1, %v428
        %v430 = vrot.slane %v421, %v429
        %v433 = vmul.f32 %v420, %v426
        %v434 = vmul.f32 %v419, %v430
        %435 = vst [vmem:[#allocation2] sm:$0xf] %v433
        %436 = vst [vmem:[#allocation2 + $0x8] sm:$0xf] %v434
        %437 = vrot.lane.b32.xlu0 %v410, 16
        %v438 = vpop.permute.xlu0 %437
        %439 = vrot.lane.b32.xlu0 %v411, 16
        %v440 = vpop.permute.xlu0 %439
        %vm441 = vcmp.lt.s32.totalorder %v417, 16
        %v442 = vsel %vm441, %v438, %v440
        %v443 = vsel %vm441, %v440, %v438
        %s444 = scalar_lea.vmem %s1, 2
        %v445 = vld [vmem:[%s444] sm:$0x3]
        %v447 = vlaneseq
        %v448 = vshrl.u32 %v447, 7
        %v449 = vsub.s32 0, %v448
        %v450 = vrot.slane %v445, %v449
        %v451 = vlaneseq
        %v452 = vshrl.u32 %v451, 7
        %v453 = vsub.s32 1, %v452
        %v454 = vrot.slane %v445, %v453
        %v457 = vmul.f32 %v443, %v450
        %v458 = vmul.f32 %v442, %v454
        %v461 = vrot.slane %v457, 4
        %v462 = vrot.slane %v458, 4
        %465 = vst [vmem:[#allocation2] sm:$0xf0] %v461
        %466 = vst [vmem:[#allocation2 + $0x8] sm:$0xf0] %v462
        %467 = vrot.lane.b32.xlu0 %v410, 15
        %v468 = vpop.permute.xlu0 %467
        %469 = vrot.lane.b32.xlu0 %v411, 15
        %v470 = vpop.permute.xlu0 %469
        %vm471 = vcmp.lt.s32.totalorder %v417, 15
        %v472 = vsel %vm471, %v468, %v470
        %v473 = vsel %vm471, %v470, %v468
        %s474 = scalar_lea.vmem %s1, 4
        %v475 = vld [vmem:[%s474] sm:$0x3]
        %v477 = vlaneseq
        %v478 = vshrl.u32 %v477, 7
        %v479 = vsub.s32 0, %v478
        %v480 = vrot.slane %v475, %v479
        %v481 = vlaneseq
        %v482 = vshrl.u32 %v481, 7
        %v483 = vsub.s32 1, %v482
        %v484 = vrot.slane %v475, %v483
        %v487 = vmul.f32 %v473, %v480
        %v488 = vmul.f32 %v472, %v484
        %489 = vst [vmem:[#allocation2 + $0x10] sm:$0xf] %v487
        %490 = vst [vmem:[#allocation2 + $0x18] sm:$0xf] %v488
        %491 = vrot.lane.b32.xlu0 %v410, 1
        %v492 = vpop.permute.xlu0 %491
        %493 = vrot.lane.b32.xlu0 %v411, 1
        %v494 = vpop.permute.xlu0 %493
        %vm495 = vcmp.lt.s32.totalorder %v417, 1
        %v496 = vsel %vm495, %v492, %v494
        %v497 = vsel %vm495, %v494, %v492
        %s498 = scalar_lea.vmem %s1, 6
        %v499 = vld [vmem:[%s498] sm:$0x3]
        %v501 = vlaneseq
        %v502 = vshrl.u32 %v501, 7
        %v503 = vsub.s32 0, %v502
        %v504 = vrot.slane %v499, %v503
        %v505 = vlaneseq
        %v506 = vshrl.u32 %v505, 7
        %v507 = vsub.s32 1, %v506
        %v508 = vrot.slane %v499, %v507
        %v511 = vmul.f32 %v497, %v504
        %v512 = vmul.f32 %v496, %v508
        %v515 = vrot.slane %v511, 4
        %v516 = vrot.slane %v512, 4
        %519 = vst [vmem:[#allocation2 + $0x10] sm:$0xf0] %v515
        %520 = vst [vmem:[#allocation2 + $0x18] sm:$0xf0] %v516
        %s521 = scalar_lea.vmem %s1, 8
        %v522 = vld [vmem:[%s521] sm:$0x3]
        %v524 = vlaneseq
        %v525 = vshrl.u32 %v524, 7
        %v526 = vsub.s32 0, %v525
        %v527 = vrot.slane %v522, %v526
        %v528 = vlaneseq
        %v529 = vshrl.u32 %v528, 7
        %v530 = vsub.s32 1, %v529
        %v531 = vrot.slane %v522, %v530
        %v534 = vmul.f32 %v410, %v527
        %v535 = vmul.f32 %v411, %v531
        %536 = vst [vmem:[#allocation2 + $0x20] sm:$0xf] %v534
        %537 = vst [vmem:[#allocation2 + $0x28] sm:$0xf] %v535
        %538 = vrot.lane.b32.xlu0 %v410, 127
        %v539 = vpop.permute.xlu0 %538
        %540 = vrot.lane.b32.xlu0 %v411, 127
        %v541 = vpop.permute.xlu0 %540
        %vm542 = vcmp.lt.s32.totalorder %v417, 127
        %v543 = vsel %vm542, %v539, %v541
        %v544 = vsel %vm542, %v541, %v539
        %s545 = scalar_lea.vmem %s1, 10
        %v546 = vld [vmem:[%s545] sm:$0x3]
        %v548 = vlaneseq
        %v549 = vshrl.u32 %v548, 7
        %v550 = vsub.s32 0, %v549
        %v551 = vrot.slane %v546, %v550
        %v552 = vlaneseq
        %v553 = vshrl.u32 %v552, 7
        %v554 = vsub.s32 1, %v553
        %v555 = vrot.slane %v546, %v554
        %v558 = vmul.f32 %v543, %v551
        %v559 = vmul.f32 %v544, %v555
        %v562 = vrot.slane %v558, 4
        %v563 = vrot.slane %v559, 4
        %566 = vst [vmem:[#allocation2 + $0x20] sm:$0xf0] %v562
        %567 = vst [vmem:[#allocation2 + $0x28] sm:$0xf0] %v563
        %568 = vrot.lane.b32.xlu0 %v410, 113
        %v569 = vpop.permute.xlu0 %568
        %570 = vrot.lane.b32.xlu0 %v411, 113
        %v571 = vpop.permute.xlu0 %570
        %vm572 = vcmp.lt.s32.totalorder %v417, 113
        %v573 = vsel %vm572, %v569, %v571
        %v574 = vsel %vm572, %v571, %v569
        %s575 = scalar_lea.vmem %s1, 12
        %v576 = vld [vmem:[%s575] sm:$0x3]
        %v578 = vlaneseq
        %v579 = vshrl.u32 %v578, 7
        %v580 = vsub.s32 0, %v579
        %v581 = vrot.slane %v576, %v580
        %v582 = vlaneseq
        %v583 = vshrl.u32 %v582, 7
        %v584 = vsub.s32 1, %v583
        %v585 = vrot.slane %v576, %v584
        %v588 = vmul.f32 %v573, %v581
        %v589 = vmul.f32 %v574, %v585
        %590 = vst [vmem:[#allocation2 + $0x30] sm:$0xf] %v588
        %591 = vst [vmem:[#allocation2 + $0x38] sm:$0xf] %v589
        %592 = vrot.lane.b32.xlu0 %v410, 112
        %v593 = vpop.permute.xlu0 %592
        %594 = vrot.lane.b32.xlu0 %v411, 112
        %v595 = vpop.permute.xlu0 %594
        %vm596 = vcmp.lt.s32.totalorder %v417, 112
        %v597 = vsel %vm596, %v593, %v595
        %v598 = vsel %vm596, %v595, %v593
        %s599 = scalar_lea.vmem %s1, 14
        %v600 = vld [vmem:[%s599] sm:$0x3]
        %v602 = vlaneseq
        %v603 = vshrl.u32 %v602, 7
        %v604 = vsub.s32 0, %v603
        %v605 = vrot.slane %v600, %v604
        %v606 = vlaneseq
        %v607 = vshrl.u32 %v606, 7
        %v608 = vsub.s32 1, %v607
        %v609 = vrot.slane %v600, %v608
        %v612 = vmul.f32 %v597, %v605
        %v613 = vmul.f32 %v598, %v609
        %v616 = vrot.slane %v612, 4
        %v617 = vrot.slane %v613, 4
        %620 = vst [vmem:[#allocation2 + $0x30] sm:$0xf0] %v616
        %621 = vst [vmem:[#allocation2 + $0x38] sm:$0xf0] %v617
        %622 = vrot.lane.b32.xlu0 %v410, 111
        %v623 = vpop.permute.xlu0 %622
        %624 = vrot.lane.b32.xlu0 %v411, 111
        %v625 = vpop.permute.xlu0 %624
        %vm626 = vcmp.lt.s32.totalorder %v417, 111
        %v627 = vsel %vm626, %v623, %v625
        %v628 = vsel %vm626, %v625, %v623
        %s629 = scalar_lea.vmem %s1, 16
        %v630 = vld [vmem:[%s629] sm:$0x3]
        %v632 = vlaneseq
        %v633 = vshrl.u32 %v632, 7
        %v634 = vsub.s32 0, %v633
        %v635 = vrot.slane %v630, %v634
        %v636 = vlaneseq
        %v637 = vshrl.u32 %v636, 7
        %v638 = vsub.s32 1, %v637
        %v639 = vrot.slane %v630, %v638
        %v642 = vmul.f32 %v627, %v635
        %v643 = vmul.f32 %v628, %v639
        %644 = vst [vmem:[#allocation2 + $0x40] sm:$0xf] %v642
        %645 = vst [vmem:[#allocation2 + $0x48] sm:$0xf] %v643
        %v646 = vld [vmem:[%s4] sm:$0xf]
        %v647 = vld [vmem:[#allocation2] sm:$0xff]
        %v648 = vld [vmem:[#allocation2 + $0x8] sm:$0xff]
        %v649 = vld [vmem:[#allocation2 + $0x10] sm:$0xff]
        %v650 = vld [vmem:[#allocation2 + $0x18] sm:$0xff]
        %v651 = vld [vmem:[#allocation2 + $0x20] sm:$0xff]
        %v652 = vld [vmem:[#allocation2 + $0x28] sm:$0xff]
        %v653 = vld [vmem:[#allocation2 + $0x30] sm:$0xff]
        %v654 = vld [vmem:[#allocation2 + $0x38] sm:$0xff]
        %v655 = vld [vmem:[#allocation2 + $0x40] sm:$0xf]
        %v656 = vld [vmem:[#allocation2 + $0x48] sm:$0xf]
        %v657 = vld [vmem:[%s5] sm:$0xf]
        %659 = vset.pattern.permute.xlu0 0
        %660 = vperm.xlu0 %659, %v657
        %v661 = vpop.permute.xlu0 %660
        %vm663 = vcmask 293888
        %v665 = vsel %vm663, %v646, 0
        %vm667 = vcmask 1043456
        %v669 = vsel %vm667, %v655, 0
        %v672 = vsel %vm667, %v656, 0
        %674 = vmatprep.subr.mxu0 %v648
        %675 = vmatpush1.msra.mxu0 %v647
        %676 = vmatprep.subr.mxu0 %v650
        %677 = vmatpush1.msra.mxu0 %v649
        %678 = vmatprep.subr.mxu0 %v652
        %679 = vmatpush1.msra.mxu0 %v651
        %680 = vmatprep.subr.mxu0 %v654
        %681 = vmatpush1.msra.mxu0 %v653
        %682 = vmatprep.subr.mxu0 %v672
        %683 = vmatpush1.msra.mxu0 %v669
        %684 = vmatprep.subr.mxu0 0.0
        %685 = vmatpush1.msra.mxu0 0.0
        %686 = vmatprep.subr.mxu0 0.0
        %687 = vmatpush1.msra.mxu0 0.0
        %688 = vmatprep.subr.mxu0 0.0
        %689 = vmatpush1.msra.mxu0 0.0
        %690 = vmatprep.subr.mxu0 0.0
        %691 = vmatpush1.msra.mxu0 0.0
        %692 = vmatprep.subr.mxu0 0.0
        %693 = vmatpush1.msra.mxu0 0.0
        %694 = vmatprep.subr.mxu0 0.0
        %695 = vmatpush1.msra.mxu0 0.0
        %696 = vmatprep.subr.mxu0 0.0
        %697 = vmatpush1.msra.mxu0 0.0
        %698 = vmatprep.subr.mxu0 0.0
        %699 = vmatpush1.msra.mxu0 0.0
        %700 = vmatprep.subr.mxu0 0.0
        %701 = vmatpush1.msra.mxu0 0.0
        %702 = vmatprep.subr.mxu0 0.0
        %703 = vmatpush1.msra.mxu0 0.0
        %704 = vmatprep.subr.mxu0 0.0
        %705 = vmatpush1.msra.mxu0 0.0
        %706 = vmatprep.subr.mxu0 0.0
        %707 = vmatpush1.msra.mxu0 0.0
        %708 = vmatprep.subr.mxu0 0.0
        %709 = vmatpush1.msra.mxu0 0.0
        %710 = vmatprep.subr.mxu0 0.0
        %711 = vmatpush1.msra.mxu0 0.0
        %712 = vmatprep.subr.mxu0 0.0
        %713 = vmatpush1.msra.mxu0 0.0
        %714 = vmatprep.subr.mxu0 0.0
        %715 = vmatpush1.msra.mxu0 0.0
        %716 = vmatprep.subr.mxu0 0.0
        %717 = vmatpush1.msra.mxu0 0.0
        %718 = vmatprep.subr.mxu0 0.0
        %719 = vmatpush1.msra.mxu0 0.0
        %720 = vmatprep.subr.mxu0 0.0
        %721 = vmatpush1.msra.mxu0 0.0
        %722 = vmatprep.subr.mxu0 0.0
        %723 = vmatpush1.msra.mxu0 0.0
        %724 = vmatprep.subr.mxu0 0.0
        %725 = vmatpush1.msra.mxu0 0.0
        %726 = vmatprep.subr.mxu0 0.0
        %727 = vmatpush1.msra.mxu0 0.0
        %728 = vmatprep.subr.mxu0 0.0
        %729 = vmatpush1.msra.mxu0 0.0
        %730 = vmatprep.subr.mxu0 0.0
        %731 = vmatpush1.msra.mxu0 0.0
        %732 = vmatprep.subr.mxu0 0.0
        %733 = vmatpush1.msra.mxu0 0.0
        %734 = vmatprep.subr.mxu0 0.0
        %735 = vmatpush1.msra.mxu0 0.0
        %736 = vmatprep.subr.mxu0 0.0
        %737 = vmatpush1.msra.mxu0 0.0
        %738 = vmatprep.mubr.f32.mxu0 0.0
        %739 = vmatmul.mubr.f32.gmra.mrb[0].mxu0 %v665
        %v740 = vpop.f32.mrb[0].mxu0
        %v741 = vadd.f32 %v661, %v740
        %v742 = vpop.f32.mrb[0].mxu0
        %v743 = vadd.f32 %v661, %v742
        %744 = vdwg.mxu0
        %v745 = vmax.f32 %v741, 0.0
        %v746 = vmax.f32 %v743, 0.0
        %v747 = vld [vmem:[%s6] sm:$0xff]
        %v748 = vld [vmem:[%s6 + $0x8] sm:$0xff]
        %v749 = vld [vmem:[%s7] sm:$0xff]
        %v750 = vld [vmem:[%s7 + $0x8] sm:$0xff]
        %752 = vset.pattern.permute.xlu0 0
        %753 = vperm.xlu0 %752, %v749
        %v754 = vpop.permute.xlu0 %753
        %757 = vset.pattern.permute.xlu0 0
        %758 = vperm.xlu0 %757, %v750
        %v759 = vpop.permute.xlu0 %758
        %vm761 = vcmask 31744
        %v763 = vsel %vm761, %v747, 0
        %v766 = vsel %vm761, %v748, 0
        %v769 = vsel %vm667, %v745, 0
        %v772 = vsel %vm667, %v746, 0
        %774 = vmatprep.subr.mxu0 %v772
        %775 = vmatpush1.msra.mxu0 %v769
        %776 = vmatprep.subr.mxu0 0.0
        %777 = vmatpush1.msra.mxu0 0.0
        %778 = vmatprep.subr.mxu0 0.0
        %779 = vmatpush1.msra.mxu0 0.0
        %780 = vmatprep.subr.mxu0 0.0
        %781 = vmatpush1.msra.mxu0 0.0
        %782 = vmatprep.subr.mxu0 0.0
        %783 = vmatpush1.msra.mxu0 0.0
        %784 = vmatprep.subr.mxu0 0.0
        %785 = vmatpush1.msra.mxu0 0.0
        %786 = vmatprep.subr.mxu0 0.0
        %787 = vmatpush1.msra.mxu0 0.0
        %788 = vmatprep.subr.mxu0 0.0
        %789 = vmatpush1.msra.mxu0 0.0
        %790 = vmatprep.subr.mxu0 0.0
        %791 = vmatpush1.msra.mxu0 0.0
        %792 = vmatprep.subr.mxu0 0.0
        %793 = vmatpush1.msra.mxu0 0.0
        %794 = vmatprep.subr.mxu0 0.0
        %795 = vmatpush1.msra.mxu0 0.0
        %796 = vmatprep.subr.mxu0 0.0
        %797 = vmatpush1.msra.mxu0 0.0
        %798 = vmatprep.subr.mxu0 0.0
        %799 = vmatpush1.msra.mxu0 0.0
        %800 = vmatprep.subr.mxu0 0.0
        %801 = vmatpush1.msra.mxu0 0.0
        %802 = vmatprep.subr.mxu0 0.0
        %803 = vmatpush1.msra.mxu0 0.0
        %804 = vmatprep.subr.mxu0 0.0
        %805 = vmatpush1.msra.mxu0 0.0
        %806 = vmatprep.subr.mxu0 0.0
        %807 = vmatpush1.msra.mxu0 0.0
        %808 = vmatprep.subr.mxu0 0.0
        %809 = vmatpush1.msra.mxu0 0.0
        %810 = vmatprep.subr.mxu0 0.0
        %811 = vmatpush1.msra.mxu0 0.0
        %812 = vmatprep.subr.mxu0 0.0
        %813 = vmatpush1.msra.mxu0 0.0
        %814 = vmatprep.subr.mxu0 0.0
        %815 = vmatpush1.msra.mxu0 0.0
        %816 = vmatprep.subr.mxu0 0.0
        %817 = vmatpush1.msra.mxu0 0.0
        %818 = vmatprep.subr.mxu0 0.0
        %819 = vmatpush1.msra.mxu0 0.0
        %820 = vmatprep.subr.mxu0 0.0
        %821 = vmatpush1.msra.mxu0 0.0
        %822 = vmatprep.subr.mxu0 0.0
        %823 = vmatpush1.msra.mxu0 0.0
        %824 = vmatprep.subr.mxu0 0.0
        %825 = vmatpush1.msra.mxu0 0.0
        %826 = vmatprep.subr.mxu0 0.0
        %827 = vmatpush1.msra.mxu0 0.0
        %828 = vmatprep.subr.mxu0 0.0
        %829 = vmatpush1.msra.mxu0 0.0
        %830 = vmatprep.subr.mxu0 0.0
        %831 = vmatpush1.msra.mxu0 0.0
        %832 = vmatprep.subr.mxu0 0.0
        %833 = vmatpush1.msra.mxu0 0.0
        %834 = vmatprep.subr.mxu0 0.0
        %835 = vmatpush1.msra.mxu0 0.0
        %836 = vmatprep.subr.mxu0 0.0
        %837 = vmatpush1.msra.mxu0 0.0
        %838 = vmatprep.mubr.f32.mxu0 0.0
        %839 = vmatmul.mubr.f32.gmra.mrb[0].mxu0 %v763
        %v840 = vpop.f32.mrb[0].mxu0
        %v841 = vadd.f32 %v754, %v840
        %v842 = vpop.f32.mrb[0].mxu0
        %v843 = vadd.f32 %v754, %v842
        %844 = vmatprep.mubr.f32.mxu0 0.0
        %845 = vmatmul.mubr.f32.gmra.mrb[0].mxu0 %v766
        %v846 = vpop.f32.mrb[0].mxu0
        %v847 = vadd.f32 %v759, %v846
        %v848 = vpop.f32.mrb[0].mxu0
        %v849 = vadd.f32 %v759, %v848
        %850 = vdwg.mxu0
        %v851 = vld [vmem:[%s291] sm:$0xff]
        %v852 = vld [vmem:[%s291 + $0x8] sm:$0xff]
        %v853 = vld [vmem:[%s291 + $0x10] sm:$0xff]
        %v854 = vld [vmem:[%s291 + $0x18] sm:$0xff]
        %v855 = vadd.f32 %v841, %v851
        %v856 = vadd.f32 %v843, %v852
        %v857 = vadd.f32 %v847, %v853
        %v858 = vadd.f32 %v849, %v854
        %v859 = vmax.f32 %v855, 0.0
        %v860 = vmax.f32 %v856, 0.0
        %v861 = vmax.f32 %v857, 0.0
        %v862 = vmax.f32 %v858, 0.0
        %863 = vst [vmem:[%s323] sm:$0xff] %v859
        %864 = vst [vmem:[%s323 + $0x8] sm:$0xff] %v860
        %865 = vst [vmem:[%s323 + $0x10] sm:$0xff] %v861
        %866 = vst [vmem:[%s323 + $0x18] sm:$0xff] %v862
        %s867 = sand.u32 %s206, 1
        %s868 = scalar_lea.sflag [#allocation5], %s867
        %s869 = sand.u32 %s206, 1
        %s870 = smul.addr %s869, 32
        %s871 = scalar_lea.vmem [#allocation6], %s870
        // Predicated region
        $region57: #{tpu_custom_call.1} parent=51 // pred_check
          %p872 = pneg %p216
        $region58: #{tpu_custom_call.1} parent=51 // pred_check_branch
          %874 = sbr.rel (%p872) target = $region60
        $region59: #{tpu_custom_call.1} parent=51 // pred_region
          %s876 = ssub.s32 512, 512
          %877 = vsyncadd %s868, %s876
          %s878 = smul.addr %s25, 4
          %s879 = smul.addr %s878, 128
          %s880 = scalar_lea.hbm %s8, %s879
          %s881 = sshll.u32 %s871, 4
          %s882 = int_to_ptr.vmem [resolvable:$true] %s881
          %887 = dma.vmem_to_hbm [thread:$0]  %s882, 512, %s880, %s868, 256, 256, 16
        $region60: #{tpu_custom_call.1} parent=51 // pred_fallthru
          _
      $region52: #{tpu_custom_call.1} parent=5 // pred_fallthru
        _
      %p888 = scmp.le.s32.totalorder 2, %s20
      // Predicated region
      $region61: #{tpu_custom_call.1} parent=5 // pred_check
        %p889 = pneg %p888
      $region62: #{tpu_custom_call.1} parent=5 // pred_check_branch
        %891 = sbr.rel (%p889) target = $region64
      $region63: #{tpu_custom_call.1} parent=5 // pred_region
        %s892 = ssub.s32 %s20, 2
        // Predicated region
        $region65: #{tpu_custom_call.1} parent=63 // pred_check
          %p893 = pneg %p222
        $region66: #{tpu_custom_call.1} parent=63 // pred_check_branch
          %895 = sbr.rel (%p893) target = $region68
        $region67: #{tpu_custom_call.1} parent=63 // pred_region
          %s896 = sand.u32 %s207, 1
          %s897 = scalar_lea.sflag [#allocation5], %s896
          %s898 = sand.u32 %s207, 1
          %s899 = smul.addr %s898, 32
          %s900 = scalar_lea.vmem [#allocation6], %s899
          %901 = dma.done %s897, 512
        $region68: #{tpu_custom_call.1} parent=63 // pred_fallthru
          _
      $region64: #{tpu_custom_call.1} parent=5 // pred_fallthru
        _
    $region6: #{tpu_custom_call.1} parent=1 // loop_footer
      %s24 = sadd.s32 1, %s20
    $region7: #{tpu_custom_call.1} parent=1 // loop_footer_branch
      %19 = sbr.rel target = $region3
    $region8: #{tpu_custom_call.1} parent=1 // loop_exit
      _
    %902 = vsyncpa [#allocation4], 1
    %s903 = scalar_lea.sflag [#allocation4], 1
    %904 = vsyncpa %s903, 1
    %905 = vsyncpa [#allocation5], 1
    %s906 = scalar_lea.sflag [#allocation5], 1
    %907 = vsyncpa %s906, 1

</llo_original>
